<compile_context>
chip_gen: v5e
topology: v5e:2x2
jax: 0.10.0
libtpu: 0.0.40
codegen_flags: <defaults>
</compile_context>

<pallas_src>
import functools

import jax
import jax.numpy as jnp
from jax.experimental import pallas as pl
from jax.experimental.pallas import tpu as pltpu


def _round_up(x, m):
    return ((x + m - 1) // m) * m


def _pick_tile(np_rows):
    # Largest "nice" tile (multiple of 128, friendly to int8 (32,128) and
    # bf16 (16,128) tiling) that divides the padded row count.
    for cand in (512, 384, 256, 128):
        if np_rows % cand == 0:
            return cand
    return 128


def _compiler_params(dimension_semantics, step_bytes):
    # Scoped-VMEM request: double-buffered working set + headroom, capped at
    # 40 MiB so it stays below v7x's 64 MiB physical VMEM (and well inside
    # v5e/v6e's 128 MiB).  Working sets here are only a few MiB per step.
    limit = int(min(max(4 * step_bytes + (8 << 20), 16 << 20), 40 << 20))
    return pltpu.CompilerParams(
        dimension_semantics=dimension_semantics,
        vmem_limit_bytes=limit,
    )


# ----------------------------------------------------------------------------
# Kernel 1: projection + hoisted attention logits
#   feat = x @ W^T            (bf16 MXU, f32 accumulate, stored bf16)
#   el   = <feat_h, attn_l_h> (block-diagonal matmul -> (rows, H))
#   er   = <feat_h, attn_r_h>
# ----------------------------------------------------------------------------
def _proj_kernel(x_ref, w_ref, albd_ref, arbd_ref, feat_ref, el_ref, er_ref):
    x = x_ref[...].astype(jnp.bfloat16)
    feat = jnp.dot(x, w_ref[...], preferred_element_type=jnp.float32)  # (tm, HD)
    feat_ref[...] = feat.astype(feat_ref.dtype)
    el_ref[...] = jnp.dot(feat, albd_ref[...],
                          preferred_element_type=jnp.float32).astype(el_ref.dtype)
    er_ref[...] = jnp.dot(feat, arbd_ref[...],
                          preferred_element_type=jnp.float32).astype(er_ref.dtype)


def _project(x_p, w_t_bf16, albd, arbd, *, tm):
    Np, K = x_p.shape
    HD = w_t_bf16.shape[1]
    H = albd.shape[1]
    step_bytes = (tm * K * 4 + K * HD * 2 + 2 * HD * H * 4
                  + tm * HD * 2 + 2 * tm * H * 4)
    return pl.pallas_call(
        _proj_kernel,
        out_shape=(
            jax.ShapeDtypeStruct((Np, HD), jnp.bfloat16),   # feat (lane-dense)
            jax.ShapeDtypeStruct((Np, H), jnp.float32),     # el
            jax.ShapeDtypeStruct((Np, H), jnp.float32),     # er
        ),
        grid_spec=pltpu.PrefetchScalarGridSpec(
            num_scalar_prefetch=0,
            grid=(Np // tm,),
            in_specs=[
                pl.BlockSpec((tm, K), lambda i: (i, 0)),
                pl.BlockSpec((K, HD), lambda i: (0, 0)),    # weight resident
                pl.BlockSpec((HD, H), lambda i: (0, 0)),
                pl.BlockSpec((HD, H), lambda i: (0, 0)),
            ],
            out_specs=[
                pl.BlockSpec((tm, HD), lambda i: (i, 0)),
                pl.BlockSpec((tm, H), lambda i: (i, 0)),
                pl.BlockSpec((tm, H), lambda i: (i, 0)),
            ],
        ),
        compiler_params=_compiler_params(("parallel",), step_bytes),
        cost_estimate=pl.CostEstimate(
            flops=int(2 * Np * K * HD + 4 * Np * HD * H),
            transcendentals=0,
            bytes_accessed=int(4 * Np * K + 2 * K * HD + 2 * Np * HD + 8 * Np * H),
        ),
    )(x_p, w_t_bf16, albd, arbd)


# ----------------------------------------------------------------------------
# Kernel 2: GAT attention (online softmax over src tiles) + fused SE block
# ----------------------------------------------------------------------------
def _gat_se_kernel(elT_ref, er_ref, feat_ref, adj_ref,
                   w1t_ref, b1_ref, w2t_ref, b2_ref,
                   o_ref, m_ref, l_ref, acc_ref,
                   *, num_heads, head_dim, negative_slope):
    H, D = num_heads, head_dim
    j = pl.program_id(1)

    @pl.when(j == 0)
    def _():
        m_ref[...] = jnp.full_like(m_ref, -1e30)
        l_ref[...] = jnp.zeros_like(l_ref)
        acc_ref[...] = jnp.zeros_like(acc_ref)

    edge = adj_ref[...] > 0                      # (tm, ts) bool, int8 in HBM
    feat_src = feat_ref[...]                     # (ts, H*D) bf16
    elT = elT_ref[...]                           # (H, ts) f32 (src logits)
    er = er_ref[...]                             # (tm, H) f32 (dst logits)

    for h in range(H):                           # static unroll, adj read once
        s = er[:, h:h + 1] + elT[h:h + 1, :]                       # (tm, ts)
        s = jnp.where(s >= 0, s, negative_slope * s)               # leaky_relu
        s = jnp.where(edge, s, -1e30)                              # mask
        m_prev = m_ref[:, h:h + 1]
        m_new = jnp.maximum(m_prev, jnp.max(s, axis=-1, keepdims=True))
        alpha = jnp.exp(m_prev - m_new)
        p = jnp.exp(s - m_new)
        p = jnp.where(edge, p, 0.0)              # needed when a tile has no edges
        l_ref[:, h:h + 1] = alpha * l_ref[:, h:h + 1] + jnp.sum(
            p, axis=-1, keepdims=True)
        m_ref[:, h:h + 1] = m_new
        f_h = feat_src[:, h * D:(h + 1) * D]                       # (ts, D) bf16
        pv = jnp.dot(p.astype(jnp.bfloat16), f_h,
                     preferred_element_type=jnp.float32)           # (tm, D) f32
        acc_ref[:, h * D:(h + 1) * D] = alpha * acc_ref[:, h * D:(h + 1) * D] + pv

    @pl.when(j == pl.num_programs(1) - 1)
    def _():
        # Normalize each head (edge_softmax denominator).
        cols = []
        for h in range(H):
            inv = pl.reciprocal(jnp.maximum(l_ref[:, h:h + 1], 1e-30), approx=True)
            cols.append(acc_ref[:, h * D:(h + 1) * D] * inv)       # (tm, D)
        rst = jnp.concatenate(cols, axis=-1)                       # (tm, H*D)

        # Fused SEBlock: mean over heads -> fc1 -> relu -> fc2 -> sigmoid.
        y = cols[0]
        for h in range(1, H):
            y = y + cols[h]
        y = y * (1.0 / H)                                          # (tm, D)
        z = jnp.dot(y, w1t_ref[...], preferred_element_type=jnp.float32)
        z = jnp.maximum(z + b1_ref[...], 0.0)                      # (tm, Dh)
        z = jnp.dot(z, w2t_ref[...], preferred_element_type=jnp.float32)
        z = z + b2_ref[...]                                        # (tm, D)
        z = 1.0 / (1.0 + jnp.exp(-z))                              # sigmoid
        z_full = jnp.concatenate([z] * H, axis=-1)                 # (tm, H*D)

        o_ref[...] = (rst * z_full).astype(o_ref.dtype)            # lane-dense


def _gat_attention_se(elT, er, feat, adj_i8, w1t, b1r, w2t, b2r,
                      *, num_heads, head_dim, negative_slope, tm, ts):
    H = num_heads
    D = head_dim
    HD = H * D
    Np = er.shape[0]
    Dh = w1t.shape[1]
    kernel = functools.partial(_gat_se_kernel, num_heads=H, head_dim=D,
                               negative_slope=negative_slope)
    step_bytes = (H * ts * 4 + tm * H * 4 + ts * HD * 2 + tm * ts
                  + (D * Dh + Dh + Dh * D + D) * 4
                  + tm * HD * 4 + tm * (HD + 2 * H) * 4)
    return pl.pallas_call(
        kernel,
        out_shape=jax.ShapeDtypeStruct((Np, HD), jnp.float32),
        grid_spec=pltpu.PrefetchScalarGridSpec(
            num_scalar_prefetch=0,
            grid=(Np // tm, Np // ts),           # dst tiles outer, src inner
            in_specs=[
                pl.BlockSpec((H, ts), lambda i, j: (0, j)),    # el (transposed)
                pl.BlockSpec((tm, H), lambda i, j: (i, 0)),    # er (dst tile)
                pl.BlockSpec((ts, HD), lambda i, j: (j, 0)),   # feat src tile
                pl.BlockSpec((tm, ts), lambda i, j: (i, j)),   # adj int8 tile
                pl.BlockSpec((D, Dh), lambda i, j: (0, 0)),    # SE fc1 weight^T
                pl.BlockSpec((1, Dh), lambda i, j: (0, 0)),    # SE fc1 bias
                pl.BlockSpec((Dh, D), lambda i, j: (0, 0)),    # SE fc2 weight^T
                pl.BlockSpec((1, D), lambda i, j: (0, 0)),     # SE fc2 bias
            ],
            out_specs=pl.BlockSpec((tm, HD), lambda i, j: (i, 0)),
            scratch_shapes=[
                pltpu.VMEM((tm, H), jnp.float32),    # running max m
                pltpu.VMEM((tm, H), jnp.float32),    # running denom l
                pltpu.VMEM((tm, HD), jnp.float32),   # running weighted sum
            ],
        ),
        compiler_params=_compiler_params(("parallel", "arbitrary"), step_bytes),
        cost_estimate=pl.CostEstimate(
            flops=int(2 * H * Np * Np * (D + 6)),
            transcendentals=int(H * Np * Np),
            bytes_accessed=int(Np * Np + (Np // tm) * Np * HD * 2
                               + Np * HD * 4 + 12 * Np * H),
        ),
    )(elT, er, feat, adj_i8, w1t, b1r, w2t, b2r)


# ----------------------------------------------------------------------------
# Full GATConvSE forward
# ----------------------------------------------------------------------------
def gat_conv_se_forward(x, adj, fc_w, attn_l, attn_r,
                        se_w1, se_b1, se_w2, se_b2,
                        *, num_heads, out_feats, negative_slope=0.2):
    """x: (N, F_in); adj[dst, src] != 0 marks an edge; attn_l/r: (H, D).

    Returns (N, num_heads, out_feats), matching GATConvSE.forward.
    """
    N = x.shape[0]
    H, D = num_heads, out_feats
    HD = H * D
    assert fc_w.shape[0] == HD

    Np = _round_up(N, 128)
    T = _pick_tile(Np)

    # Pad node dimension once (zero rows contribute nothing: adj padding is 0).
    x_p = jnp.pad(x.astype(jnp.float32), ((0, Np - N), (0, 0)))
    adj_i8 = jnp.pad((adj != 0).astype(jnp.int8), ((0, Np - N), (0, Np - N)))

    # Block-diagonal attention vectors so el/er fall out of a single matmul
    # on the lane-dense (rows, H*D) feature layout.
    eye = jnp.eye(H, dtype=jnp.float32)
    albd = (attn_l.astype(jnp.float32)[:, :, None] * eye[:, None, :]).reshape(HD, H)
    arbd = (attn_r.astype(jnp.float32)[:, :, None] * eye[:, None, :]).reshape(HD, H)

    w_t = jnp.transpose(fc_w).astype(jnp.bfloat16)                 # (F_in, HD)

    feat, el, er = _project(x_p, w_t, albd, arbd, tm=T)            # bf16 / f32
    elT = jnp.transpose(el)                                        # (H, Np), tiny

    w1t = jnp.transpose(se_w1).astype(jnp.float32)                 # (D, Dh)
    w2t = jnp.transpose(se_w2).astype(jnp.float32)                 # (Dh, D)
    b1r = se_b1.reshape(1, -1).astype(jnp.float32)
    b2r = se_b2.reshape(1, -1).astype(jnp.float32)

    out_flat = _gat_attention_se(elT, er, feat, adj_i8, w1t, b1r, w2t, b2r,
                                 num_heads=H, head_dim=D,
                                 negative_slope=negative_slope, tm=T, ts=T)
    # (N, H*D) -> (N, H, D) is a free reshape (no transpose / data movement).
    return out_flat[:N].reshape(N, H, D)


if __name__ == "__main__":
    key = jax.random.PRNGKey(0)
    N, F_IN, D, H, RED = 16, 32, 64, 4, 16                         # small shapes
    DH = D // RED
    ks = jax.random.split(key, 9)

    x = jax.random.normal(ks[0], (N, F_IN), dtype=jnp.float32)
    # Random adjacency + self-loops so no destination has zero in-degree
    # (GATConv asserts on zero in-degree graphs).
    adj = (jax.random.uniform(ks[1], (N, N)) < 0.3).astype(jnp.float32)
    adj = jnp.maximum(adj, jnp.eye(N, dtype=jnp.float32))

    fc_w = jax.random.normal(ks[2], (H * D, F_IN), jnp.float32) * 0.1
    attn_l = jax.random.normal(ks[3], (H, D), jnp.float32) * 0.1
    attn_r = jax.random.normal(ks[4], (H, D), jnp.float32) * 0.1
    se_w1 = jax.random.normal(ks[5], (DH, D), jnp.float32) * 0.1
    se_b1 = jax.random.normal(ks[6], (DH,), jnp.float32) * 0.1
    se_w2 = jax.random.normal(ks[7], (D, DH), jnp.float32) * 0.1
    se_b2 = jax.random.normal(ks[8], (D,), jnp.float32) * 0.1

    out = gat_conv_se_forward(x, adj, fc_w, attn_l, attn_r,
                              se_w1, se_b1, se_w2, se_b2,
                              num_heads=H, out_feats=D)
    out = jax.block_until_ready(out)

    # Pure-JAX f32 reference (dense formulation of the DGL ops + SE block).
    hp = jax.lax.Precision.HIGHEST
    feat_ref = jnp.dot(x, fc_w.T, precision=hp).reshape(N, H, D)
    el_ref = jnp.sum(feat_ref * attn_l[None], axis=-1)             # (N, H)
    er_ref = jnp.sum(feat_ref * attn_r[None], axis=-1)             # (N, H)
    e = el_ref[None, :, :] + er_ref[:, None, :]                    # (dst, src, H)
    e = jnp.where(e >= 0, e, 0.2 * e)
    e = jnp.where(adj[:, :, None] > 0, e, -1e30)
    m = jnp.max(e, axis=1, keepdims=True)
    p = jnp.exp(e - m) * (adj[:, :, None] > 0)
    a = p / jnp.maximum(jnp.sum(p, axis=1, keepdims=True), 1e-30)
    rst = jnp.einsum("dsh,shf->dhf", a, feat_ref, precision=hp)    # (N, H, D)
    y = rst.mean(axis=1)                                           # (N, D)
    z = jnp.maximum(jnp.dot(y, se_w1.T, precision=hp) + se_b1, 0.0)
    z = jax.nn.sigmoid(jnp.dot(z, se_w2.T, precision=hp) + se_b2)
    ref = rst * z[:, None, :]

    assert out.shape == (N, H, D)
    max_err = float(jnp.max(jnp.abs(out - ref)))
    # bf16 MXU inputs (f32 accumulation) -> slightly looser tolerance vs f32 ref.
    assert jnp.allclose(out, ref, atol=2e-2, rtol=2e-2), f"mismatch {max_err}"
    print("KERNEL_OK")
</pallas_src>

<mosaic_0001>
module attributes {stable_mosaic.version = 11 : i64} {
  func.func @_proj_kernel(%arg0: i32, %arg1: memref<128x32xf32, #tpu.memory_space<vmem>>, %arg2: memref<32x256xbf16, #tpu.memory_space<vmem>>, %arg3: memref<256x4xf32, #tpu.memory_space<vmem>>, %arg4: memref<256x4xf32, #tpu.memory_space<vmem>>, %arg5: memref<128x256xbf16, #tpu.memory_space<vmem>>, %arg6: memref<128x4xf32, #tpu.memory_space<vmem>>, %arg7: memref<128x4xf32, #tpu.memory_space<vmem>>) attributes {dimension_semantics = [#tpu.dimension_semantics<parallel>], iteration_bounds = array<i64: 1>, scalar_prefetch = 0 : i64, scratch_operands = 0 : i64, tpu.core_type = #tpu.core_type<tc>, window_params = [{transform_indices = @transform_0, window_bounds = array<i64: 128, 32>}, {pipeline_mode = #tpu.pipeline_mode<synchronous>, transform_indices = @transform_1, window_bounds = array<i64: 32, 256>}, {pipeline_mode = #tpu.pipeline_mode<synchronous>, transform_indices = @transform_2, window_bounds = array<i64: 256, 4>}, {pipeline_mode = #tpu.pipeline_mode<synchronous>, transform_indices = @transform_3, window_bounds = array<i64: 256, 4>}, {transform_indices = @transform_4, window_bounds = array<i64: 128, 256>}, {transform_indices = @transform_5, window_bounds = array<i64: 128, 4>}, {transform_indices = @transform_6, window_bounds = array<i64: 128, 4>}]} {
    %c0 = arith.constant 0 : index
    %c0_0 = arith.constant 0 : index
    %0 = vector.load %arg1[%c0, %c0_0] : memref<128x32xf32, #tpu.memory_space<vmem>>, vector<128x32xf32>
    %1 = arith.truncf %0 : vector<128x32xf32> to vector<128x32xbf16>
    %c0_1 = arith.constant 0 : index
    %c0_2 = arith.constant 0 : index
    %2 = vector.load %arg2[%c0_1, %c0_2] : memref<32x256xbf16, #tpu.memory_space<vmem>>, vector<32x256xbf16>
    %cst = arith.constant dense<0.000000e+00> : vector<128x256xf32>
    %3 = tpu.matmul %1, %2, %cst {dimension_numbers = #tpu.dot_dimension_numbers<[1], [0], [0], [1], [0, 0, 1, 1], [], []>} : vector<128x32xbf16>, vector<32x256xbf16>, vector<128x256xf32> -> vector<128x256xf32>
    %4 = arith.truncf %3 : vector<128x256xf32> to vector<128x256xbf16>
    %c0_3 = arith.constant 0 : index
    %c0_4 = arith.constant 0 : index
    %5 = vector.load %arg5[%c0_3, %c0_4] : memref<128x256xbf16, #tpu.memory_space<vmem>>, vector<128x256xbf16>
    tpu.vector_store %arg5[%c0_3, %c0_4], %4 {strides = array<i32>} : memref<128x256xbf16, #tpu.memory_space<vmem>>, vector<128x256xbf16>,
    %c0_5 = arith.constant 0 : index
    %c0_6 = arith.constant 0 : index
    %6 = vector.load %arg3[%c0_5, %c0_6] : memref<256x4xf32, #tpu.memory_space<vmem>>, vector<256x4xf32>
    %cst_7 = arith.constant dense<0.000000e+00> : vector<128x4xf32>
    %7 = tpu.matmul %3, %6, %cst_7 {dimension_numbers = #tpu.dot_dimension_numbers<[1], [0], [0], [1], [0, 0, 1, 1], [], []>} : vector<128x256xf32>, vector<256x4xf32>, vector<128x4xf32> -> vector<128x4xf32>
    %c0_8 = arith.constant 0 : index
    %c0_9 = arith.constant 0 : index
    %8 = vector.load %arg6[%c0_8, %c0_9] : memref<128x4xf32, #tpu.memory_space<vmem>>, vector<128x4xf32>
    tpu.vector_store %arg6[%c0_8, %c0_9], %7 {strides = array<i32>} : memref<128x4xf32, #tpu.memory_space<vmem>>, vector<128x4xf32>,
    %c0_10 = arith.constant 0 : index
    %c0_11 = arith.constant 0 : index
    %9 = vector.load %arg4[%c0_10, %c0_11] : memref<256x4xf32, #tpu.memory_space<vmem>>, vector<256x4xf32>
    %cst_12 = arith.constant dense<0.000000e+00> : vector<128x4xf32>
    %10 = tpu.matmul %3, %9, %cst_12 {dimension_numbers = #tpu.dot_dimension_numbers<[1], [0], [0], [1], [0, 0, 1, 1], [], []>} : vector<128x256xf32>, vector<256x4xf32>, vector<128x4xf32> -> vector<128x4xf32>
    %c0_13 = arith.constant 0 : index
    %c0_14 = arith.constant 0 : index
    %11 = vector.load %arg7[%c0_13, %c0_14] : memref<128x4xf32, #tpu.memory_space<vmem>>, vector<128x4xf32>
    tpu.vector_store %arg7[%c0_13, %c0_14], %10 {strides = array<i32>} : memref<128x4xf32, #tpu.memory_space<vmem>>, vector<128x4xf32>,
    return
  }
  func.func @transform_0(%arg0: i32) -> (i32, i32) {
    %c0_i32 = arith.constant 0 : i32
    %c0_i32_0 = arith.constant 0 : i32
    return %arg0, %c0_i32 : i32, i32
  }
  func.func @transform_1(%arg0: i32) -> (i32, i32) {
    %c0_i32 = arith.constant 0 : i32
    %c0_i32_0 = arith.constant 0 : i32
    %c0_i32_1 = arith.constant 0 : i32
    return %c0_i32, %c0_i32_0 : i32, i32
  }
  func.func @transform_2(%arg0: i32) -> (i32, i32) {
    %c0_i32 = arith.constant 0 : i32
    %c0_i32_0 = arith.constant 0 : i32
    %c0_i32_1 = arith.constant 0 : i32
    return %c0_i32, %c0_i32_0 : i32, i32
  }
  func.func @transform_3(%arg0: i32) -> (i32, i32) {
    %c0_i32 = arith.constant 0 : i32
    %c0_i32_0 = arith.constant 0 : i32
    %c0_i32_1 = arith.constant 0 : i32
    return %c0_i32, %c0_i32_0 : i32, i32
  }
  func.func @transform_4(%arg0: i32) -> (i32, i32) {
    %c0_i32 = arith.constant 0 : i32
    %c0_i32_0 = arith.constant 0 : i32
    return %arg0, %c0_i32 : i32, i32
  }
  func.func @transform_5(%arg0: i32) -> (i32, i32) {
    %c0_i32 = arith.constant 0 : i32
    %c0_i32_0 = arith.constant 0 : i32
    return %arg0, %c0_i32 : i32, i32
  }
  func.func @transform_6(%arg0: i32) -> (i32, i32) {
    %c0_i32 = arith.constant 0 : i32
    %c0_i32_0 = arith.constant 0 : i32
    return %arg0, %c0_i32 : i32, i32
  }
}

</mosaic_0001>

<llo_original>
// kernel: tpu_custom_call.1
$region0: #{tpu_custom_call.1}
  #allocation0 [shape = 'u32[]', space=smem, size = 0x4, offset = 0x4, fixed_abs, tag = 'smem constant byte address 0x4 - core index']
  #allocation1 [shape = 'u32[72,128]{1,0:T(1,128)}', space=vmem, size = 0x9000, scoped, tag = 'internal scratch']
  %s0 = inlined_call_operand.vmem [shape: f32[128,32], index: 0, kind: input, shape index: {}]
  %s1 = inlined_call_operand.vmem [shape: bf16[32,256], index: 1, kind: input, shape index: {}]
  %s2 = inlined_call_operand.vmem [shape: f32[256,4], index: 2, kind: input, shape index: {}]
  %s3 = inlined_call_operand.vmem [shape: f32[256,4], index: 3, kind: input, shape index: {}]
  %s4 = inlined_call_operand.hbm [shape: bf16[128,256], index: 4, kind: output, shape index: {0}]
  %s5 = inlined_call_operand.vmem [shape: f32[128,4], index: 5, kind: output, shape index: {1}]
  %s6 = inlined_call_operand.vmem [shape: f32[128,4], index: 6, kind: output, shape index: {2}]
  %7 = xla_tuple %s4, %s5, %s6
  %s8 = sld [smem:[#allocation0]]
  $region42: #{tpu_custom_call.1} parent=0
    _
  %s10 = ssub.s32 1, %s8
  %s11 = scalar_select 0, %s10, %s8
  $region1: #{tpu_custom_call.1} parent=0
    #allocation2 [shape = 'u8[65536]{0}', space=vmem, size = 0x10000, scoped, tag = 'output window, operand 0, single buffered']
    #allocation3 [shape = 's32[1]{0}', space=sflag, size = 0x4, scoped, tag = 'scoped memory for tpu_custom_call.1']
    %12 = vsyncpa [#allocation3], 0
    // Predicated region
    $region2: #{tpu_custom_call.1} parent=1 // pred_check
      _
    $region3: #{tpu_custom_call.1} parent=1 // pred_check_branch
      %14 = sbr.rel (0) target = $region5
    $region4: #{tpu_custom_call.1} parent=1 // pred_region
      _
    $region5: #{tpu_custom_call.1} parent=1 // pred_fallthru
      _
    // Predicated region
    $region6: #{tpu_custom_call.1} parent=1 // pred_check
      _
    $region7: #{tpu_custom_call.1} parent=1 // pred_check_branch
      %16 = sbr.rel (0) target = $region9
    $region8: #{tpu_custom_call.1} parent=1 // pred_region
      _
    $region9: #{tpu_custom_call.1} parent=1 // pred_fallthru
      _
    // Predicated region
    $region10: #{tpu_custom_call.1} parent=1 // pred_check
      _
    $region11: #{tpu_custom_call.1} parent=1 // pred_check_branch
      %18 = sbr.rel (0) target = $region13
    $region12: #{tpu_custom_call.1} parent=1 // pred_region
      _
    $region13: #{tpu_custom_call.1} parent=1 // pred_fallthru
      _
    // Predicated region
    $region14: #{tpu_custom_call.1} parent=1 // pred_check
      _
    $region15: #{tpu_custom_call.1} parent=1 // pred_check_branch
      %20 = sbr.rel (0) target = $region17
    $region16: #{tpu_custom_call.1} parent=1 // pred_region
      _
    $region17: #{tpu_custom_call.1} parent=1 // pred_fallthru
      _
    %v22 = vld [vmem:[%s0] sm:$0xff]
    %v23 = vld [vmem:[%s0 + $0x8] sm:$0xff]
    %v24 = vld [vmem:[%s0 + $0x10] sm:$0xff]
    %v25 = vld [vmem:[%s0 + $0x18] sm:$0xff]
    %v26 = vld [vmem:[%s0 + $0x20] sm:$0xff]
    %v27 = vld [vmem:[%s0 + $0x28] sm:$0xff]
    %v28 = vld [vmem:[%s0 + $0x30] sm:$0xff]
    %v29 = vld [vmem:[%s0 + $0x38] sm:$0xff]
    %v30 = vld [vmem:[%s0 + $0x40] sm:$0xff]
    %v31 = vld [vmem:[%s0 + $0x48] sm:$0xff]
    %v32 = vld [vmem:[%s0 + $0x50] sm:$0xff]
    %v33 = vld [vmem:[%s0 + $0x58] sm:$0xff]
    %v34 = vld [vmem:[%s0 + $0x60] sm:$0xff]
    %v35 = vld [vmem:[%s0 + $0x68] sm:$0xff]
    %v36 = vld [vmem:[%s0 + $0x70] sm:$0xff]
    %v37 = vld [vmem:[%s0 + $0x78] sm:$0xff]
    %v38 = vpack.c.bf16 %v23, %v22
    %v39 = vpack.c.bf16 %v25, %v24
    %v40 = vpack.c.bf16 %v27, %v26
    %v41 = vpack.c.bf16 %v29, %v28
    %v42 = vpack.c.bf16 %v31, %v30
    %v43 = vpack.c.bf16 %v33, %v32
    %v44 = vpack.c.bf16 %v35, %v34
    %v45 = vpack.c.bf16 %v37, %v36
    %v46 = vld [vmem:[%s1] sm:$0xff]
    %v47 = vld [vmem:[%s1 + $0x8] sm:$0xff]
    %v48 = vld [vmem:[%s1 + $0x10] sm:$0xff]
    %v49 = vld [vmem:[%s1 + $0x18] sm:$0xff]
    %v54 = vunpack.c.l.b16 %v46
    %v55 = vunpack.c.h.b16 %v46
    %v56 = vunpack.c.l.b16 %v47
    %v57 = vunpack.c.h.b16 %v47
    %v58 = vunpack.c.l.b16 %v48
    %v59 = vunpack.c.h.b16 %v48
    %v60 = vunpack.c.l.b16 %v49
    %v61 = vunpack.c.h.b16 %v49
    %v62 = vpack.c.b16 %v56, %v54
    %v63 = vpack.c.b16 %v57, %v55
    %v64 = vpack.c.b16 %v60, %v58
    %v65 = vpack.c.b16 %v61, %v59
    %vm70 = vcmask 261120
    %v72 = vsel %vm70, %v38, 0
    %v75 = vsel %vm70, %v39, 0
    %v78 = vsel %vm70, %v40, 0
    %v81 = vsel %vm70, %v41, 0
    %v84 = vsel %vm70, %v42, 0
    %v87 = vsel %vm70, %v43, 0
    %v90 = vsel %vm70, %v44, 0
    %v93 = vsel %vm70, %v45, 0
    %95 = vmatpush.bf16.msra.mxu0 0
    %96 = vmatpush.bf16.msra.mxu0 0
    %97 = vmatpush.bf16.msra.mxu0 0
    %98 = vmatpush.bf16.msra.mxu0 0
    %99 = vmatpush.bf16.msra.mxu0 0
    %100 = vmatpush.bf16.msra.mxu0 0
    %101 = vmatpush.bf16.msra.mxu0 %v64
    %102 = vmatpush.bf16.msra.mxu0 %v62
    %103 = vmatmul.bf16.gmra.mxu0 %v72
    %v104 = vpop.f32.mrf.mxu0
    %v105 = vadd.f32 0.0, %v104
    %v106 = vpop.f32.mrf.mxu0
    %v107 = vadd.f32 0.0, %v106
    %108 = vmatmul.bf16.gmra.mxu0 %v75
    %v109 = vpop.f32.mrf.mxu0
    %v110 = vadd.f32 0.0, %v109
    %v111 = vpop.f32.mrf.mxu0
    %v112 = vadd.f32 0.0, %v111
    %113 = vmatmul.bf16.gmra.mxu0 %v78
    %v114 = vpop.f32.mrf.mxu0
    %v115 = vadd.f32 0.0, %v114
    %v116 = vpop.f32.mrf.mxu0
    %v117 = vadd.f32 0.0, %v116
    %118 = vmatmul.bf16.gmra.mxu0 %v81
    %v119 = vpop.f32.mrf.mxu0
    %v120 = vadd.f32 0.0, %v119
    %v121 = vpop.f32.mrf.mxu0
    %v122 = vadd.f32 0.0, %v121
    %123 = vmatmul.bf16.gmra.mxu0 %v84
    %v124 = vpop.f32.mrf.mxu0
    %v125 = vadd.f32 0.0, %v124
    %v126 = vpop.f32.mrf.mxu0
    %v127 = vadd.f32 0.0, %v126
    %128 = vmatmul.bf16.gmra.mxu0 %v87
    %v129 = vpop.f32.mrf.mxu0
    %v130 = vadd.f32 0.0, %v129
    %v131 = vpop.f32.mrf.mxu0
    %v132 = vadd.f32 0.0, %v131
    %133 = vmatmul.bf16.gmra.mxu0 %v90
    %v134 = vpop.f32.mrf.mxu0
    %v135 = vadd.f32 0.0, %v134
    %v136 = vpop.f32.mrf.mxu0
    %v137 = vadd.f32 0.0, %v136
    %138 = vmatmul.bf16.gmra.mxu0 %v93
    %v139 = vpop.f32.mrf.mxu0
    %v140 = vadd.f32 0.0, %v139
    %v141 = vpop.f32.mrf.mxu0
    %v142 = vadd.f32 0.0, %v141
    %143 = vdwg.mxu0
    %144 = vmatpush.bf16.msra.mxu0 0
    %145 = vmatpush.bf16.msra.mxu0 0
    %146 = vmatpush.bf16.msra.mxu0 0
    %147 = vmatpush.bf16.msra.mxu0 0
    %148 = vmatpush.bf16.msra.mxu0 0
    %149 = vmatpush.bf16.msra.mxu0 0
    %150 = vmatpush.bf16.msra.mxu0 %v65
    %151 = vmatpush.bf16.msra.mxu0 %v63
    %152 = vmatmul.bf16.gmra.mxu0 %v72
    %v153 = vpop.f32.mrf.mxu0
    %v154 = vadd.f32 0.0, %v153
    %v155 = vpop.f32.mrf.mxu0
    %v156 = vadd.f32 0.0, %v155
    %157 = vmatmul.bf16.gmra.mxu0 %v75
    %v158 = vpop.f32.mrf.mxu0
    %v159 = vadd.f32 0.0, %v158
    %v160 = vpop.f32.mrf.mxu0
    %v161 = vadd.f32 0.0, %v160
    %162 = vmatmul.bf16.gmra.mxu0 %v78
    %v163 = vpop.f32.mrf.mxu0
    %v164 = vadd.f32 0.0, %v163
    %v165 = vpop.f32.mrf.mxu0
    %v166 = vadd.f32 0.0, %v165
    %167 = vmatmul.bf16.gmra.mxu0 %v81
    %v168 = vpop.f32.mrf.mxu0
    %v169 = vadd.f32 0.0, %v168
    %v170 = vpop.f32.mrf.mxu0
    %v171 = vadd.f32 0.0, %v170
    %172 = vmatmul.bf16.gmra.mxu0 %v84
    %v173 = vpop.f32.mrf.mxu0
    %v174 = vadd.f32 0.0, %v173
    %v175 = vpop.f32.mrf.mxu0
    %v176 = vadd.f32 0.0, %v175
    %177 = vmatmul.bf16.gmra.mxu0 %v87
    %v178 = vpop.f32.mrf.mxu0
    %v179 = vadd.f32 0.0, %v178
    %v180 = vpop.f32.mrf.mxu0
    %v181 = vadd.f32 0.0, %v180
    %182 = vmatmul.bf16.gmra.mxu0 %v90
    %v183 = vpop.f32.mrf.mxu0
    %v184 = vadd.f32 0.0, %v183
    %v185 = vpop.f32.mrf.mxu0
    %v186 = vadd.f32 0.0, %v185
    %187 = vmatmul.bf16.gmra.mxu0 %v93
    %v188 = vpop.f32.mrf.mxu0
    %v189 = vadd.f32 0.0, %v188
    %v190 = vpop.f32.mrf.mxu0
    %v191 = vadd.f32 0.0, %v190
    %192 = vdwg.mxu0
    %v193 = vpack.c.bf16 %v154, %v105
    %v194 = vpack.c.bf16 %v156, %v107
    %v195 = vpack.c.bf16 %v159, %v110
    %v196 = vpack.c.bf16 %v161, %v112
    %v197 = vpack.c.bf16 %v164, %v115
    %v198 = vpack.c.bf16 %v166, %v117
    %v199 = vpack.c.bf16 %v169, %v120
    %v200 = vpack.c.bf16 %v171, %v122
    %v201 = vpack.c.bf16 %v174, %v125
    %v202 = vpack.c.bf16 %v176, %v127
    %v203 = vpack.c.bf16 %v179, %v130
    %v204 = vpack.c.bf16 %v181, %v132
    %v205 = vpack.c.bf16 %v184, %v135
    %v206 = vpack.c.bf16 %v186, %v137
    %v207 = vpack.c.bf16 %v189, %v140
    %v208 = vpack.c.bf16 %v191, %v142
    %209 = vst [vmem:[#allocation2] sm:$0xff] %v193
    %210 = vst [vmem:[#allocation2 + $0x8] sm:$0xff] %v194
    %211 = vst [vmem:[#allocation2 + $0x10] sm:$0xff] %v195
    %212 = vst [vmem:[#allocation2 + $0x18] sm:$0xff] %v196
    %213 = vst [vmem:[#allocation2 + $0x20] sm:$0xff] %v197
    %214 = vst [vmem:[#allocation2 + $0x28] sm:$0xff] %v198
    %215 = vst [vmem:[#allocation2 + $0x30] sm:$0xff] %v199
    %216 = vst [vmem:[#allocation2 + $0x38] sm:$0xff] %v200
    %217 = vst [vmem:[#allocation2 + $0x40] sm:$0xff] %v201
    %218 = vst [vmem:[#allocation2 + $0x48] sm:$0xff] %v202
    %219 = vst [vmem:[#allocation2 + $0x50] sm:$0xff] %v203
    %220 = vst [vmem:[#allocation2 + $0x58] sm:$0xff] %v204
    %221 = vst [vmem:[#allocation2 + $0x60] sm:$0xff] %v205
    %222 = vst [vmem:[#allocation2 + $0x68] sm:$0xff] %v206
    %223 = vst [vmem:[#allocation2 + $0x70] sm:$0xff] %v207
    %224 = vst [vmem:[#allocation2 + $0x78] sm:$0xff] %v208
    %v225 = vld [vmem:[%s2] sm:$0xff]
    %v226 = vld [vmem:[%s2 + $0x8] sm:$0xff]
    %v227 = vld [vmem:[%s2 + $0x10] sm:$0xff]
    %v228 = vld [vmem:[%s2 + $0x18] sm:$0xff]
    %v229 = vld [vmem:[%s2 + $0x20] sm:$0xff]
    %v230 = vld [vmem:[%s2 + $0x28] sm:$0xff]
    %v231 = vld [vmem:[%s2 + $0x30] sm:$0xff]
    %v232 = vld [vmem:[%s2 + $0x38] sm:$0xff]
    %v233 = vld [vmem:[%s2 + $0x40] sm:$0xff]
    %v234 = vld [vmem:[%s2 + $0x48] sm:$0xff]
    %v235 = vld [vmem:[%s2 + $0x50] sm:$0xff]
    %v236 = vld [vmem:[%s2 + $0x58] sm:$0xff]
    %v237 = vld [vmem:[%s2 + $0x60] sm:$0xff]
    %v238 = vld [vmem:[%s2 + $0x68] sm:$0xff]
    %v239 = vld [vmem:[%s2 + $0x70] sm:$0xff]
    %v240 = vld [vmem:[%s2 + $0x78] sm:$0xff]
    %v241 = vld [vmem:[%s2 + $0x80] sm:$0xff]
    %v242 = vld [vmem:[%s2 + $0x88] sm:$0xff]
    %v243 = vld [vmem:[%s2 + $0x90] sm:$0xff]
    %v244 = vld [vmem:[%s2 + $0x98] sm:$0xff]
    %v245 = vld [vmem:[%s2 + $0xa0] sm:$0xff]
    %v246 = vld [vmem:[%s2 + $0xa8] sm:$0xff]
    %v247 = vld [vmem:[%s2 + $0xb0] sm:$0xff]
    %v248 = vld [vmem:[%s2 + $0xb8] sm:$0xff]
    %v249 = vld [vmem:[%s2 + $0xc0] sm:$0xff]
    %v250 = vld [vmem:[%s2 + $0xc8] sm:$0xff]
    %v251 = vld [vmem:[%s2 + $0xd0] sm:$0xff]
    %v252 = vld [vmem:[%s2 + $0xd8] sm:$0xff]
    %v253 = vld [vmem:[%s2 + $0xe0] sm:$0xff]
    %v254 = vld [vmem:[%s2 + $0xe8] sm:$0xff]
    %v255 = vld [vmem:[%s2 + $0xf0] sm:$0xff]
    %v256 = vld [vmem:[%s2 + $0xf8] sm:$0xff]
    %257 = vmatpush.msra.mxu0 %v240
    %258 = vmatpush.msra.mxu0 %v239
    %259 = vmatpush.msra.mxu0 %v238
    %260 = vmatpush.msra.mxu0 %v237
    %261 = vmatpush.msra.mxu0 %v236
    %262 = vmatpush.msra.mxu0 %v235
    %263 = vmatpush.msra.mxu0 %v234
    %264 = vmatpush.msra.mxu0 %v233
    %265 = vmatpush.msra.mxu0 %v232
    %266 = vmatpush.msra.mxu0 %v231
    %267 = vmatpush.msra.mxu0 %v230
    %268 = vmatpush.msra.mxu0 %v229
    %269 = vmatpush.msra.mxu0 %v228
    %270 = vmatpush.msra.mxu0 %v227
    %271 = vmatpush.msra.mxu0 %v226
    %272 = vmatpush.msra.mxu0 %v225
    %273 = vmatmul.f32.gmra.mxu0 %v105
    %v274 = vpop.f32.mrf.mxu0
    %v275 = vadd.f32 0.0, %v274
    %276 = vmatmul.f32.gmra.mxu0 %v107
    %v277 = vpop.f32.mrf.mxu0
    %v278 = vadd.f32 0.0, %v277
    %279 = vmatmul.f32.gmra.mxu0 %v110
    %v280 = vpop.f32.mrf.mxu0
    %v281 = vadd.f32 0.0, %v280
    %282 = vmatmul.f32.gmra.mxu0 %v112
    %v283 = vpop.f32.mrf.mxu0
    %v284 = vadd.f32 0.0, %v283
    %285 = vmatmul.f32.gmra.mxu0 %v115
    %v286 = vpop.f32.mrf.mxu0
    %v287 = vadd.f32 0.0, %v286
    %288 = vmatmul.f32.gmra.mxu0 %v117
    %v289 = vpop.f32.mrf.mxu0
    %v290 = vadd.f32 0.0, %v289
    %291 = vmatmul.f32.gmra.mxu0 %v120
    %v292 = vpop.f32.mrf.mxu0
    %v293 = vadd.f32 0.0, %v292
    %294 = vmatmul.f32.gmra.mxu0 %v122
    %v295 = vpop.f32.mrf.mxu0
    %v296 = vadd.f32 0.0, %v295
    %297 = vmatmul.f32.gmra.mxu0 %v125
    %v298 = vpop.f32.mrf.mxu0
    %v299 = vadd.f32 0.0, %v298
    %300 = vmatmul.f32.gmra.mxu0 %v127
    %v301 = vpop.f32.mrf.mxu0
    %v302 = vadd.f32 0.0, %v301
    %303 = vmatmul.f32.gmra.mxu0 %v130
    %v304 = vpop.f32.mrf.mxu0
    %v305 = vadd.f32 0.0, %v304
    %306 = vmatmul.f32.gmra.mxu0 %v132
    %v307 = vpop.f32.mrf.mxu0
    %v308 = vadd.f32 0.0, %v307
    %309 = vmatmul.f32.gmra.mxu0 %v135
    %v310 = vpop.f32.mrf.mxu0
    %v311 = vadd.f32 0.0, %v310
    %312 = vmatmul.f32.gmra.mxu0 %v137
    %v313 = vpop.f32.mrf.mxu0
    %v314 = vadd.f32 0.0, %v313
    %315 = vmatmul.f32.gmra.mxu0 %v140
    %v316 = vpop.f32.mrf.mxu0
    %v317 = vadd.f32 0.0, %v316
    %318 = vmatmul.f32.gmra.mxu0 %v142
    %v319 = vpop.f32.mrf.mxu0
    %v320 = vadd.f32 0.0, %v319
    %321 = vdwg.mxu0
    %322 = vmatpush.msra.mxu0 %v256
    %323 = vmatpush.msra.mxu0 %v255
    %324 = vmatpush.msra.mxu0 %v254
    %325 = vmatpush.msra.mxu0 %v253
    %326 = vmatpush.msra.mxu0 %v252
    %327 = vmatpush.msra.mxu0 %v251
    %328 = vmatpush.msra.mxu0 %v250
    %329 = vmatpush.msra.mxu0 %v249
    %330 = vmatpush.msra.mxu0 %v248
    %331 = vmatpush.msra.mxu0 %v247
    %332 = vmatpush.msra.mxu0 %v246
    %333 = vmatpush.msra.mxu0 %v245
    %334 = vmatpush.msra.mxu0 %v244
    %335 = vmatpush.msra.mxu0 %v243
    %336 = vmatpush.msra.mxu0 %v242
    %337 = vmatpush.msra.mxu0 %v241
    %338 = vmatmul.f32.gmra.mxu0 %v154
    %v339 = vpop.f32.mrf.mxu0
    %v340 = vadd.f32 %v275, %v339
    %341 = vmatmul.f32.gmra.mxu0 %v156
    %v342 = vpop.f32.mrf.mxu0
    %v343 = vadd.f32 %v278, %v342
    %344 = vmatmul.f32.gmra.mxu0 %v159
    %v345 = vpop.f32.mrf.mxu0
    %v346 = vadd.f32 %v281, %v345
    %347 = vmatmul.f32.gmra.mxu0 %v161
    %v348 = vpop.f32.mrf.mxu0
    %v349 = vadd.f32 %v284, %v348
    %350 = vmatmul.f32.gmra.mxu0 %v164
    %v351 = vpop.f32.mrf.mxu0
    %v352 = vadd.f32 %v287, %v351
    %353 = vmatmul.f32.gmra.mxu0 %v166
    %v354 = vpop.f32.mrf.mxu0
    %v355 = vadd.f32 %v290, %v354
    %356 = vmatmul.f32.gmra.mxu0 %v169
    %v357 = vpop.f32.mrf.mxu0
    %v358 = vadd.f32 %v293, %v357
    %359 = vmatmul.f32.gmra.mxu0 %v171
    %v360 = vpop.f32.mrf.mxu0
    %v361 = vadd.f32 %v296, %v360
    %362 = vmatmul.f32.gmra.mxu0 %v174
    %v363 = vpop.f32.mrf.mxu0
    %v364 = vadd.f32 %v299, %v363
    %365 = vmatmul.f32.gmra.mxu0 %v176
    %v366 = vpop.f32.mrf.mxu0
    %v367 = vadd.f32 %v302, %v366
    %368 = vmatmul.f32.gmra.mxu0 %v179
    %v369 = vpop.f32.mrf.mxu0
    %v370 = vadd.f32 %v305, %v369
    %371 = vmatmul.f32.gmra.mxu0 %v181
    %v372 = vpop.f32.mrf.mxu0
    %v373 = vadd.f32 %v308, %v372
    %374 = vmatmul.f32.gmra.mxu0 %v184
    %v375 = vpop.f32.mrf.mxu0
    %v376 = vadd.f32 %v311, %v375
    %377 = vmatmul.f32.gmra.mxu0 %v186
    %v378 = vpop.f32.mrf.mxu0
    %v379 = vadd.f32 %v314, %v378
    %380 = vmatmul.f32.gmra.mxu0 %v189
    %v381 = vpop.f32.mrf.mxu0
    %v382 = vadd.f32 %v317, %v381
    %383 = vmatmul.f32.gmra.mxu0 %v191
    %v384 = vpop.f32.mrf.mxu0
    %v385 = vadd.f32 %v320, %v384
    %386 = vdwg.mxu0
    %vm387 = vcmask 31744
    %388 = vst.msk [vmem:[%s5] sm:$0xff] %vm387, %v340
    %389 = vst.msk [vmem:[%s5 + $0x8] sm:$0xff] %vm387, %v343
    %390 = vst.msk [vmem:[%s5 + $0x10] sm:$0xff] %vm387, %v346
    %391 = vst.msk [vmem:[%s5 + $0x18] sm:$0xff] %vm387, %v349
    %392 = vst.msk [vmem:[%s5 + $0x20] sm:$0xff] %vm387, %v352
    %393 = vst.msk [vmem:[%s5 + $0x28] sm:$0xff] %vm387, %v355
    %394 = vst.msk [vmem:[%s5 + $0x30] sm:$0xff] %vm387, %v358
    %395 = vst.msk [vmem:[%s5 + $0x38] sm:$0xff] %vm387, %v361
    %396 = vst.msk [vmem:[%s5 + $0x40] sm:$0xff] %vm387, %v364
    %397 = vst.msk [vmem:[%s5 + $0x48] sm:$0xff] %vm387, %v367
    %398 = vst.msk [vmem:[%s5 + $0x50] sm:$0xff] %vm387, %v370
    %399 = vst.msk [vmem:[%s5 + $0x58] sm:$0xff] %vm387, %v373
    %400 = vst.msk [vmem:[%s5 + $0x60] sm:$0xff] %vm387, %v376
    %401 = vst.msk [vmem:[%s5 + $0x68] sm:$0xff] %vm387, %v379
    %402 = vst.msk [vmem:[%s5 + $0x70] sm:$0xff] %vm387, %v382
    %403 = vst.msk [vmem:[%s5 + $0x78] sm:$0xff] %vm387, %v385
    %v404 = vld [vmem:[%s3] sm:$0xff]
    %v405 = vld [vmem:[%s3 + $0x8] sm:$0xff]
    %v406 = vld [vmem:[%s3 + $0x10] sm:$0xff]
    %v407 = vld [vmem:[%s3 + $0x18] sm:$0xff]
    %v408 = vld [vmem:[%s3 + $0x20] sm:$0xff]
    %v409 = vld [vmem:[%s3 + $0x28] sm:$0xff]
    %v410 = vld [vmem:[%s3 + $0x30] sm:$0xff]
    %v411 = vld [vmem:[%s3 + $0x38] sm:$0xff]
    %v412 = vld [vmem:[%s3 + $0x40] sm:$0xff]
    %v413 = vld [vmem:[%s3 + $0x48] sm:$0xff]
    %v414 = vld [vmem:[%s3 + $0x50] sm:$0xff]
    %v415 = vld [vmem:[%s3 + $0x58] sm:$0xff]
    %v416 = vld [vmem:[%s3 + $0x60] sm:$0xff]
    %v417 = vld [vmem:[%s3 + $0x68] sm:$0xff]
    %v418 = vld [vmem:[%s3 + $0x70] sm:$0xff]
    %v419 = vld [vmem:[%s3 + $0x78] sm:$0xff]
    %v420 = vld [vmem:[%s3 + $0x80] sm:$0xff]
    %v421 = vld [vmem:[%s3 + $0x88] sm:$0xff]
    %v422 = vld [vmem:[%s3 + $0x90] sm:$0xff]
    %v423 = vld [vmem:[%s3 + $0x98] sm:$0xff]
    %v424 = vld [vmem:[%s3 + $0xa0] sm:$0xff]
    %v425 = vld [vmem:[%s3 + $0xa8] sm:$0xff]
    %v426 = vld [vmem:[%s3 + $0xb0] sm:$0xff]
    %v427 = vld [vmem:[%s3 + $0xb8] sm:$0xff]
    %v428 = vld [vmem:[%s3 + $0xc0] sm:$0xff]
    %v429 = vld [vmem:[%s3 + $0xc8] sm:$0xff]
    %v430 = vld [vmem:[%s3 + $0xd0] sm:$0xff]
    %v431 = vld [vmem:[%s3 + $0xd8] sm:$0xff]
    %v432 = vld [vmem:[%s3 + $0xe0] sm:$0xff]
    %v433 = vld [vmem:[%s3 + $0xe8] sm:$0xff]
    %v434 = vld [vmem:[%s3 + $0xf0] sm:$0xff]
    %v435 = vld [vmem:[%s3 + $0xf8] sm:$0xff]
    %436 = vmatpush.msra.mxu0 %v419
    %437 = vmatpush.msra.mxu0 %v418
    %438 = vmatpush.msra.mxu0 %v417
    %439 = vmatpush.msra.mxu0 %v416
    %440 = vmatpush.msra.mxu0 %v415
    %441 = vmatpush.msra.mxu0 %v414
    %442 = vmatpush.msra.mxu0 %v413
    %443 = vmatpush.msra.mxu0 %v412
    %444 = vmatpush.msra.mxu0 %v411
    %445 = vmatpush.msra.mxu0 %v410
    %446 = vmatpush.msra.mxu0 %v409
    %447 = vmatpush.msra.mxu0 %v408
    %448 = vmatpush.msra.mxu0 %v407
    %449 = vmatpush.msra.mxu0 %v406
    %450 = vmatpush.msra.mxu0 %v405
    %451 = vmatpush.msra.mxu0 %v404
    %452 = vmatmul.f32.gmra.mxu0 %v105
    %v453 = vpop.f32.mrf.mxu0
    %v454 = vadd.f32 0.0, %v453
    %455 = vmatmul.f32.gmra.mxu0 %v107
    %v456 = vpop.f32.mrf.mxu0
    %v457 = vadd.f32 0.0, %v456
    %458 = vmatmul.f32.gmra.mxu0 %v110
    %v459 = vpop.f32.mrf.mxu0
    %v460 = vadd.f32 0.0, %v459
    %461 = vmatmul.f32.gmra.mxu0 %v112
    %v462 = vpop.f32.mrf.mxu0
    %v463 = vadd.f32 0.0, %v462
    %464 = vmatmul.f32.gmra.mxu0 %v115
    %v465 = vpop.f32.mrf.mxu0
    %v466 = vadd.f32 0.0, %v465
    %467 = vmatmul.f32.gmra.mxu0 %v117
    %v468 = vpop.f32.mrf.mxu0
    %v469 = vadd.f32 0.0, %v468
    %470 = vmatmul.f32.gmra.mxu0 %v120
    %v471 = vpop.f32.mrf.mxu0
    %v472 = vadd.f32 0.0, %v471
    %473 = vmatmul.f32.gmra.mxu0 %v122
    %v474 = vpop.f32.mrf.mxu0
    %v475 = vadd.f32 0.0, %v474
    %476 = vmatmul.f32.gmra.mxu0 %v125
    %v477 = vpop.f32.mrf.mxu0
    %v478 = vadd.f32 0.0, %v477
    %479 = vmatmul.f32.gmra.mxu0 %v127
    %v480 = vpop.f32.mrf.mxu0
    %v481 = vadd.f32 0.0, %v480
    %482 = vmatmul.f32.gmra.mxu0 %v130
    %v483 = vpop.f32.mrf.mxu0
    %v484 = vadd.f32 0.0, %v483
    %485 = vmatmul.f32.gmra.mxu0 %v132
    %v486 = vpop.f32.mrf.mxu0
    %v487 = vadd.f32 0.0, %v486
    %488 = vmatmul.f32.gmra.mxu0 %v135
    %v489 = vpop.f32.mrf.mxu0
    %v490 = vadd.f32 0.0, %v489
    %491 = vmatmul.f32.gmra.mxu0 %v137
    %v492 = vpop.f32.mrf.mxu0
    %v493 = vadd.f32 0.0, %v492
    %494 = vmatmul.f32.gmra.mxu0 %v140
    %v495 = vpop.f32.mrf.mxu0
    %v496 = vadd.f32 0.0, %v495
    %497 = vmatmul.f32.gmra.mxu0 %v142
    %v498 = vpop.f32.mrf.mxu0
    %v499 = vadd.f32 0.0, %v498
    %500 = vdwg.mxu0
    %501 = vmatpush.msra.mxu0 %v435
    %502 = vmatpush.msra.mxu0 %v434
    %503 = vmatpush.msra.mxu0 %v433
    %504 = vmatpush.msra.mxu0 %v432
    %505 = vmatpush.msra.mxu0 %v431
    %506 = vmatpush.msra.mxu0 %v430
    %507 = vmatpush.msra.mxu0 %v429
    %508 = vmatpush.msra.mxu0 %v428
    %509 = vmatpush.msra.mxu0 %v427
    %510 = vmatpush.msra.mxu0 %v426
    %511 = vmatpush.msra.mxu0 %v425
    %512 = vmatpush.msra.mxu0 %v424
    %513 = vmatpush.msra.mxu0 %v423
    %514 = vmatpush.msra.mxu0 %v422
    %515 = vmatpush.msra.mxu0 %v421
    %516 = vmatpush.msra.mxu0 %v420
    %517 = vmatmul.f32.gmra.mxu0 %v154
    %v518 = vpop.f32.mrf.mxu0
    %v519 = vadd.f32 %v454, %v518
    %520 = vmatmul.f32.gmra.mxu0 %v156
    %v521 = vpop.f32.mrf.mxu0
    %v522 = vadd.f32 %v457, %v521
    %523 = vmatmul.f32.gmra.mxu0 %v159
    %v524 = vpop.f32.mrf.mxu0
    %v525 = vadd.f32 %v460, %v524
    %526 = vmatmul.f32.gmra.mxu0 %v161
    %v527 = vpop.f32.mrf.mxu0
    %v528 = vadd.f32 %v463, %v527
    %529 = vmatmul.f32.gmra.mxu0 %v164
    %v530 = vpop.f32.mrf.mxu0
    %v531 = vadd.f32 %v466, %v530
    %532 = vmatmul.f32.gmra.mxu0 %v166
    %v533 = vpop.f32.mrf.mxu0
    %v534 = vadd.f32 %v469, %v533
    %535 = vmatmul.f32.gmra.mxu0 %v169
    %v536 = vpop.f32.mrf.mxu0
    %v537 = vadd.f32 %v472, %v536
    %538 = vmatmul.f32.gmra.mxu0 %v171
    %v539 = vpop.f32.mrf.mxu0
    %v540 = vadd.f32 %v475, %v539
    %541 = vmatmul.f32.gmra.mxu0 %v174
    %v542 = vpop.f32.mrf.mxu0
    %v543 = vadd.f32 %v478, %v542
    %544 = vmatmul.f32.gmra.mxu0 %v176
    %v545 = vpop.f32.mrf.mxu0
    %v546 = vadd.f32 %v481, %v545
    %547 = vmatmul.f32.gmra.mxu0 %v179
    %v548 = vpop.f32.mrf.mxu0
    %v549 = vadd.f32 %v484, %v548
    %550 = vmatmul.f32.gmra.mxu0 %v181
    %v551 = vpop.f32.mrf.mxu0
    %v552 = vadd.f32 %v487, %v551
    %553 = vmatmul.f32.gmra.mxu0 %v184
    %v554 = vpop.f32.mrf.mxu0
    %v555 = vadd.f32 %v490, %v554
    %556 = vmatmul.f32.gmra.mxu0 %v186
    %v557 = vpop.f32.mrf.mxu0
    %v558 = vadd.f32 %v493, %v557
    %559 = vmatmul.f32.gmra.mxu0 %v189
    %v560 = vpop.f32.mrf.mxu0
    %v561 = vadd.f32 %v496, %v560
    %562 = vmatmul.f32.gmra.mxu0 %v191
    %v563 = vpop.f32.mrf.mxu0
    %v564 = vadd.f32 %v499, %v563
    %565 = vdwg.mxu0
    %566 = vst.msk [vmem:[%s6] sm:$0xff] %vm387, %v519
    %567 = vst.msk [vmem:[%s6 + $0x8] sm:$0xff] %vm387, %v522
    %568 = vst.msk [vmem:[%s6 + $0x10] sm:$0xff] %vm387, %v525
    %569 = vst.msk [vmem:[%s6 + $0x18] sm:$0xff] %vm387, %v528
    %570 = vst.msk [vmem:[%s6 + $0x20] sm:$0xff] %vm387, %v531
    %571 = vst.msk [vmem:[%s6 + $0x28] sm:$0xff] %vm387, %v534
    %572 = vst.msk [vmem:[%s6 + $0x30] sm:$0xff] %vm387, %v537
    %573 = vst.msk [vmem:[%s6 + $0x38] sm:$0xff] %vm387, %v540
    %574 = vst.msk [vmem:[%s6 + $0x40] sm:$0xff] %vm387, %v543
    %575 = vst.msk [vmem:[%s6 + $0x48] sm:$0xff] %vm387, %v546
    %576 = vst.msk [vmem:[%s6 + $0x50] sm:$0xff] %vm387, %v549
    %577 = vst.msk [vmem:[%s6 + $0x58] sm:$0xff] %vm387, %v552
    %578 = vst.msk [vmem:[%s6 + $0x60] sm:$0xff] %vm387, %v555
    %579 = vst.msk [vmem:[%s6 + $0x68] sm:$0xff] %vm387, %v558
    %580 = vst.msk [vmem:[%s6 + $0x70] sm:$0xff] %vm387, %v561
    %581 = vst.msk [vmem:[%s6 + $0x78] sm:$0xff] %vm387, %v564
    // Predicated region
    $region18: #{tpu_custom_call.1} parent=1 // pred_check
      _
    $region19: #{tpu_custom_call.1} parent=1 // pred_check_branch
      %583 = sbr.rel (0) target = $region21
    $region20: #{tpu_custom_call.1} parent=1 // pred_region
      %585 = vsyncadd [#allocation3], 0
      %s586 = sshll.u32 [#allocation2], 4
      %s587 = int_to_ptr.vmem [resolvable:$true] %s586
      %s588 = sshll.u32 %s4, 4
      %s589 = int_to_ptr.hbm [resolvable:$true] %s588
      %594 = dma.vmem_to_hbm [thread:$0]  %s587, 2048, %s589, [#allocation3], 128, 128, 8
    $region21: #{tpu_custom_call.1} parent=1 // pred_fallthru
      _
    // Predicated region
    $region22: #{tpu_custom_call.1} parent=1 // pred_check
      _
    $region23: #{tpu_custom_call.1} parent=1 // pred_check_branch
      %596 = sbr.rel (0) target = $region25
    $region24: #{tpu_custom_call.1} parent=1 // pred_region
      _
    $region25: #{tpu_custom_call.1} parent=1 // pred_fallthru
      _
    // Predicated region
    $region26: #{tpu_custom_call.1} parent=1 // pred_check
      _
    $region27: #{tpu_custom_call.1} parent=1 // pred_check_branch
      %598 = sbr.rel (0) target = $region29
    $region28: #{tpu_custom_call.1} parent=1 // pred_region
      _
    $region29: #{tpu_custom_call.1} parent=1 // pred_fallthru
      _
    // Predicated region
    $region30: #{tpu_custom_call.1} parent=1 // pred_check
      _
    $region31: #{tpu_custom_call.1} parent=1 // pred_check_branch
      %600 = sbr.rel (0) target = $region33
    $region32: #{tpu_custom_call.1} parent=1 // pred_region
      %602 = dma.done [#allocation3], 2048
    $region33: #{tpu_custom_call.1} parent=1 // pred_fallthru
      _
    // Predicated region
    $region34: #{tpu_custom_call.1} parent=1 // pred_check
      _
    $region35: #{tpu_custom_call.1} parent=1 // pred_check_branch
      %604 = sbr.rel (0) target = $region37
    $region36: #{tpu_custom_call.1} parent=1 // pred_region
      _
    $region37: #{tpu_custom_call.1} parent=1 // pred_fallthru
      _
    // Predicated region
    $region38: #{tpu_custom_call.1} parent=1 // pred_check
      _
    $region39: #{tpu_custom_call.1} parent=1 // pred_check_branch
      %606 = sbr.rel (0) target = $region41
    $region40: #{tpu_custom_call.1} parent=1 // pred_region
      _
    $region41: #{tpu_custom_call.1} parent=1 // pred_fallthru
      _
    %607 = vsyncpa [#allocation3], 1

</llo_original>
